<compile_context>
chip_gen: v7x
topology: tpu7x:2x2x1
jax: 0.10.0
libtpu: 0.0.40
codegen_flags: <defaults>
</compile_context>

<pallas_src>
import functools

import jax
import jax.numpy as jnp
from jax.experimental import pallas as pl
from jax.experimental.pallas import tpu as pltpu


def hdnet_kernel(x_ref, w1t_ref, b1_ref, w2_ref, w1s_ref, out_ref):
    # x tile : [TR, P*D] f32 (P samples packed along lanes)
    # w1t    : [P*D, P*H] f32 (block-diagonal W1^T, VMEM-resident)
    # b1, w2 : [1, P*H]   f32 (tiled)
    # w1s    : [P*H, P*D] f32 (block-diagonal symplectic-folded W1)
    x = x_ref[...]

    # Hidden pre-activation (MXU, f32 operands + f32 accumulation).
    z = jnp.dot(x, w1t_ref[...], preferred_element_type=jnp.float32) + b1_ref[...]
    a = jnp.tanh(z)                                  # EUP

    # d(sum H)/dz scaled by output weights (VPU, rides in idle slots).
    s = (1.0 - a * a) * w2_ref[...]                  # [TR, P*H]

    # Second matmul against the block-diagonal symplectic-folded weight
    # writes the final packed output directly: out = [dH/dp, -dH/dq] per
    # sample.  Lane width is P*D (>= 128) -> unmasked, lane-dense stores.
    out_ref[...] = jnp.dot(s, w1s_ref[...], preferred_element_type=jnp.float32)


def _pick_pack(D, target_lanes=256):
    """Pick packing factor P so P*D hits a lane-dense width (256 then 128)."""
    for lanes in (target_lanes, 128):
        if lanes % D == 0:
            return lanes // D
    return 1


def _prep_weights(w1, b1, w2, P):
    """One-time weight prep: transpose, symplectic fold, block-diag P-fold."""
    H, D = w1.shape
    d = D // 2
    w1 = w1.astype(jnp.float32)
    w1t = w1.T                                                    # [D, H]
    # out = [dH/dp, -dH/dq]  ==  s @ [W1[:, d:], -W1[:, :d]]
    w1s = jnp.concatenate([w1[:, d:], -w1[:, :d]], axis=1)        # [H, D]

    eye_p = jnp.eye(P, dtype=jnp.float32)
    # blkdiag_P(w1t): [(p*D+d), (q*H+h)] = eye[p,q] * w1t[d,h]
    w1t_blk = jnp.einsum("pq,dh->pdqh", eye_p, w1t).reshape(P * D, P * H)
    # blkdiag_P(w1s): [(p*H+h), (q*D+d)] = eye[p,q] * w1s[h,d]
    w1s_blk = jnp.einsum("pq,hd->phqd", eye_p, w1s).reshape(P * H, P * D)

    b1_t = jnp.tile(jnp.reshape(b1, (1, H)).astype(jnp.float32), (1, P))
    w2_t = jnp.tile(jnp.reshape(w2, (1, H)).astype(jnp.float32), (1, P))
    return w1t_blk, b1_t, w2_t, w1s_blk


@functools.partial(jax.jit, static_argnames=("pack", "tb_max"))
def hdnet_forward(t, x, w1, b1, w2, *, pack=None, tb_max=8192):
    """t is accepted for API parity with the PyTorch forward but is unused."""
    del t
    B, D = x.shape
    H = w1.shape[0]

    P = _pick_pack(D) if pack is None else pack
    lanes = P * D
    w1t_blk, b1_t, w2_t, w1s_blk = _prep_weights(w1, b1, w2, P)

    # ---- pack the batch into lane-dense slab rows -------------------------
    x_in = x.astype(jnp.float32)
    b_pad = ((B + P - 1) // P) * P            # tiny (<P rows) packing round-up
    if b_pad != B:
        x_in = jnp.pad(x_in, ((0, b_pad - B), (0, 0)))
    rows = b_pad // P
    xs = x_in.reshape(rows, lanes)            # free row-major view

    # ---- choose the row tile ----------------------------------------------
    # Target ~tb_max samples per grid step; prefer a divisor of `rows` so no
    # whole-array pad copy is needed when B is large; keep >=2 grid steps
    # possible for v7x megacore sharding whenever the batch allows it.
    max_rows = max(8, ((tb_max // P) // 8) * 8)
    if rows <= max_rows:
        tb_rows = rows                        # single full-array block
        pad_rows = 0
    else:
        tb_rows = max_rows
        cand = tb_rows
        while cand >= 8 and rows % cand:
            cand -= 8
        if cand >= 8:
            tb_rows = cand                    # divisor found -> no pad copy
            pad_rows = 0
        else:
            pad_rows = (-rows) % tb_rows      # ragged tail only
    if pad_rows:
        xs = jnp.pad(xs, ((0, pad_rows), (0, 0)))
    rows_pad = rows + pad_rows
    n_blocks = rows_pad // tb_rows

    # ---- cost hint for XLA's scheduler (e.g. inside an ODE loop) ----------
    n_samples = rows_pad * P
    weight_bytes = 4 * (w1t_blk.size + w1s_blk.size + b1_t.size + w2_t.size)
    cost = pl.CostEstimate(
        flops=4 * n_samples * D * H,          # two [*,H]x[H,D]-class matmuls
        transcendentals=n_samples * H,        # tanh
        bytes_accessed=2 * n_samples * D * 4 + weight_bytes,
    )

    out_packed = pl.pallas_call(
        hdnet_kernel,
        out_shape=jax.ShapeDtypeStruct((rows_pad, lanes), jnp.float32),
        grid=(n_blocks,),
        in_specs=[
            pl.BlockSpec((tb_rows, lanes), lambda i: (i, 0)),   # x: batch-tiled
            pl.BlockSpec((P * D, P * H), lambda i: (0, 0)),     # w1t_blk resident
            pl.BlockSpec((1, P * H), lambda i: (0, 0)),         # b1 resident
            pl.BlockSpec((1, P * H), lambda i: (0, 0)),         # w2 resident
            pl.BlockSpec((P * H, P * D), lambda i: (0, 0)),     # w1s_blk resident
        ],
        out_specs=pl.BlockSpec((tb_rows, lanes), lambda i: (i, 0)),
        compiler_params=pltpu.CompilerParams(
            dimension_semantics=("parallel",),   # shard batch across TCs (v7x)
        ),
        cost_estimate=cost,
    )(xs, w1t_blk, b1_t, w2_t, w1s_blk)

    # Unpack slab rows back to [B, D] samples.
    return out_packed.reshape(rows_pad * P, D)[:B]


def hdnet_reference(x, w1, b1, w2, b2):
    """Pure-JAX reference using autodiff, mirroring torch.autograd.grad."""

    def H_sum(xx):
        h = jnp.tanh(xx @ w1.T + b1)          # [B, H]
        out = h @ w2.T + b2                   # [B, 1]
        return out.sum()

    dH = jax.grad(H_sum)(x)                   # [B, D]
    d = x.shape[1] // 2
    dq, dp = dH[:, :d], dH[:, d:]
    return jnp.concatenate([dp, -dq], axis=1)


if __name__ == "__main__":
    key = jax.random.PRNGKey(0)
    B, D, H = 8, 32, 64                       # D even: q, p each D//2 = 16

    k_x, k_w1, k_b1, k_w2, k_b2 = jax.random.split(key, 5)
    x = jax.random.normal(k_x, (B, D), dtype=jnp.float32)
    t = jnp.float32(0.0)                      # unused, kept for signature parity

    # Deterministic hnet (Hamiltonian MLP) parameters.
    w1 = 0.1 * jax.random.normal(k_w1, (H, D), dtype=jnp.float32)
    b1 = 0.1 * jax.random.normal(k_b1, (1, H), dtype=jnp.float32)
    w2 = 0.1 * jax.random.normal(k_w2, (1, H), dtype=jnp.float32)
    b2 = 0.1 * jax.random.normal(k_b2, (1,), dtype=jnp.float32)  # drops out of grad

    out = hdnet_forward(t, x, w1, b1, w2)
    out = jax.block_until_ready(out)

    ref = hdnet_reference(x, w1, b1, w2, b2)
    assert out.shape == (B, D)
    # f32 operands + f32 accumulation; tolerance covers MXU pass rounding.
    assert jnp.allclose(out, ref, atol=1e-2, rtol=1e-2), "mismatch vs autodiff ref"

    print("KERNEL_OK")
</pallas_src>

<mosaic_0001>
module attributes {stable_mosaic.version = 11 : i64} {
  func.func @hdnet_kernel(%arg0: i32, %arg1: memref<1x256xf32, #tpu.memory_space<vmem>>, %arg2: memref<256x512xf32, #tpu.memory_space<vmem>>, %arg3: memref<1x512xf32, #tpu.memory_space<vmem>>, %arg4: memref<1x512xf32, #tpu.memory_space<vmem>>, %arg5: memref<512x256xf32, #tpu.memory_space<vmem>>, %arg6: memref<1x256xf32, #tpu.memory_space<vmem>>) attributes {dimension_semantics = [#tpu.dimension_semantics<parallel>], iteration_bounds = array<i64: 1>, scalar_prefetch = 0 : i64, scratch_operands = 0 : i64, tpu.core_type = #tpu.core_type<tc>, window_params = [{transform_indices = @transform_0, window_bounds = array<i64: 1, 256>}, {pipeline_mode = #tpu.pipeline_mode<synchronous>, transform_indices = @transform_1, window_bounds = array<i64: 256, 512>}, {pipeline_mode = #tpu.pipeline_mode<synchronous>, transform_indices = @transform_2, window_bounds = array<i64: 1, 512>}, {pipeline_mode = #tpu.pipeline_mode<synchronous>, transform_indices = @transform_3, window_bounds = array<i64: 1, 512>}, {pipeline_mode = #tpu.pipeline_mode<synchronous>, transform_indices = @transform_4, window_bounds = array<i64: 512, 256>}, {transform_indices = @transform_5, window_bounds = array<i64: 1, 256>}]} {
    %c0 = arith.constant 0 : index
    %c0_0 = arith.constant 0 : index
    %0 = vector.load %arg1[%c0, %c0_0] : memref<1x256xf32, #tpu.memory_space<vmem>>, vector<1x256xf32>
    %c0_1 = arith.constant 0 : index
    %c0_2 = arith.constant 0 : index
    %1 = vector.load %arg2[%c0_1, %c0_2] : memref<256x512xf32, #tpu.memory_space<vmem>>, vector<256x512xf32>
    %cst = arith.constant dense<0.000000e+00> : vector<1x512xf32>
    %2 = tpu.matmul %0, %1, %cst {dimension_numbers = #tpu.dot_dimension_numbers<[1], [0], [0], [1], [0, 0, 1, 1], [], []>} : vector<1x256xf32>, vector<256x512xf32>, vector<1x512xf32> -> vector<1x512xf32>
    %c0_3 = arith.constant 0 : index
    %c0_4 = arith.constant 0 : index
    %3 = vector.load %arg3[%c0_3, %c0_4] : memref<1x512xf32, #tpu.memory_space<vmem>>, vector<1x512xf32>
    %4 = arith.addf %2, %3 : vector<1x512xf32>
    %5 = math.tanh %4 : vector<1x512xf32>
    %6 = arith.mulf %5, %5 : vector<1x512xf32>
    %cst_5 = arith.constant 1.000000e+00 : f32
    %7 = vector.broadcast %cst_5 : f32 to vector<1x512xf32>
    %8 = arith.subf %7, %6 : vector<1x512xf32>
    %c0_6 = arith.constant 0 : index
    %c0_7 = arith.constant 0 : index
    %9 = vector.load %arg4[%c0_6, %c0_7] : memref<1x512xf32, #tpu.memory_space<vmem>>, vector<1x512xf32>
    %10 = arith.mulf %8, %9 : vector<1x512xf32>
    %c0_8 = arith.constant 0 : index
    %c0_9 = arith.constant 0 : index
    %11 = vector.load %arg5[%c0_8, %c0_9] : memref<512x256xf32, #tpu.memory_space<vmem>>, vector<512x256xf32>
    %cst_10 = arith.constant dense<0.000000e+00> : vector<1x256xf32>
    %12 = tpu.matmul %10, %11, %cst_10 {dimension_numbers = #tpu.dot_dimension_numbers<[1], [0], [0], [1], [0, 0, 1, 1], [], []>} : vector<1x512xf32>, vector<512x256xf32>, vector<1x256xf32> -> vector<1x256xf32>
    %c0_11 = arith.constant 0 : index
    %c0_12 = arith.constant 0 : index
    %13 = vector.load %arg6[%c0_11, %c0_12] : memref<1x256xf32, #tpu.memory_space<vmem>>, vector<1x256xf32>
    tpu.vector_store %arg6[%c0_11, %c0_12], %12 {strides = array<i32>} : memref<1x256xf32, #tpu.memory_space<vmem>>, vector<1x256xf32>,
    return
  }
  func.func @transform_0(%arg0: i32) -> (i32, i32) {
    %c0_i32 = arith.constant 0 : i32
    %c0_i32_0 = arith.constant 0 : i32
    return %arg0, %c0_i32 : i32, i32
  }
  func.func @transform_1(%arg0: i32) -> (i32, i32) {
    %c0_i32 = arith.constant 0 : i32
    %c0_i32_0 = arith.constant 0 : i32
    %c0_i32_1 = arith.constant 0 : i32
    return %c0_i32, %c0_i32_0 : i32, i32
  }
  func.func @transform_2(%arg0: i32) -> (i32, i32) {
    %c0_i32 = arith.constant 0 : i32
    %c0_i32_0 = arith.constant 0 : i32
    %c0_i32_1 = arith.constant 0 : i32
    return %c0_i32, %c0_i32_0 : i32, i32
  }
  func.func @transform_3(%arg0: i32) -> (i32, i32) {
    %c0_i32 = arith.constant 0 : i32
    %c0_i32_0 = arith.constant 0 : i32
    %c0_i32_1 = arith.constant 0 : i32
    return %c0_i32, %c0_i32_0 : i32, i32
  }
  func.func @transform_4(%arg0: i32) -> (i32, i32) {
    %c0_i32 = arith.constant 0 : i32
    %c0_i32_0 = arith.constant 0 : i32
    %c0_i32_1 = arith.constant 0 : i32
    return %c0_i32, %c0_i32_0 : i32, i32
  }
  func.func @transform_5(%arg0: i32) -> (i32, i32) {
    %c0_i32 = arith.constant 0 : i32
    %c0_i32_0 = arith.constant 0 : i32
    return %arg0, %c0_i32 : i32, i32
  }
}

</mosaic_0001>

<llo_original>
// kernel: hdnet_forward.1
$region0: #{hdnet_forward.1}
  #allocation0 [shape = 'u32[]', space=smem, size = 0x4, offset = 0x4, fixed_abs, tag = 'smem constant byte address 0x4 - core index']
  #allocation1 [shape = 'u32[144,128]{1,0:T(1,128)}', space=vmem, size = 0x12000, scoped, tag = 'internal scratch']
  %s0 = inlined_call_operand.vmem [shape: f32[1,256], index: 0, kind: input, shape index: {}]
  %s1 = inlined_call_operand.vmem [shape: f32[256,512], index: 1, kind: input, shape index: {}]
  %s2 = inlined_call_operand.vmem [shape: f32[1,512], index: 2, kind: input, shape index: {}]
  %s3 = inlined_call_operand.vmem [shape: f32[1,512], index: 3, kind: input, shape index: {}]
  %s4 = inlined_call_operand.vmem [shape: f32[512,256], index: 4, kind: input, shape index: {}]
  %s5 = inlined_call_operand.vmem [shape: f32[1,256], index: 5, kind: output, shape index: {}]
  %s6 = sld [smem:[#allocation0]]
  $region30: #{hdnet_forward.1} parent=0
    _
  %s8 = ssub.s32 1, %s6
  %s9 = scalar_select 0, %s8, %s6
  // Predicated region
  $region2: #{hdnet_forward.1} parent=0 // pred_check
    _
  $region3: #{hdnet_forward.1} parent=0 // pred_check_branch
    %11 = sbr.rel (0) target = $region5
  $region4: #{hdnet_forward.1} parent=0 // pred_region
    _
  $region5: #{hdnet_forward.1} parent=0 // pred_fallthru
    _
  // Predicated region
  $region6: #{hdnet_forward.1} parent=0 // pred_check
    _
  $region7: #{hdnet_forward.1} parent=0 // pred_check_branch
    %13 = sbr.rel (0) target = $region9
  $region8: #{hdnet_forward.1} parent=0 // pred_region
    _
  $region9: #{hdnet_forward.1} parent=0 // pred_fallthru
    _
  // Predicated region
  $region10: #{hdnet_forward.1} parent=0 // pred_check
    _
  $region11: #{hdnet_forward.1} parent=0 // pred_check_branch
    %15 = sbr.rel (0) target = $region13
  $region12: #{hdnet_forward.1} parent=0 // pred_region
    _
  $region13: #{hdnet_forward.1} parent=0 // pred_fallthru
    _
  // Predicated region
  $region14: #{hdnet_forward.1} parent=0 // pred_check
    _
  $region15: #{hdnet_forward.1} parent=0 // pred_check_branch
    %17 = sbr.rel (0) target = $region17
  $region16: #{hdnet_forward.1} parent=0 // pred_region
    _
  $region17: #{hdnet_forward.1} parent=0 // pred_fallthru
    _
  // Predicated region
  $region18: #{hdnet_forward.1} parent=0 // pred_check
    _
  $region19: #{hdnet_forward.1} parent=0 // pred_check_branch
    %19 = sbr.rel (0) target = $region21
  $region20: #{hdnet_forward.1} parent=0 // pred_region
    _
  $region21: #{hdnet_forward.1} parent=0 // pred_fallthru
    _
  %v20 = vld [vmem:[%s0] sm:$0x3]
  %v21 = vld [vmem:[%s1] sm:$0xff]
  %v22 = vld [vmem:[%s1 + $0x8] sm:$0xff]
  %v23 = vld [vmem:[%s1 + $0x10] sm:$0xff]
  %v24 = vld [vmem:[%s1 + $0x18] sm:$0xff]
  %v25 = vld [vmem:[%s1 + $0x20] sm:$0xff]
  %v26 = vld [vmem:[%s1 + $0x28] sm:$0xff]
  %v27 = vld [vmem:[%s1 + $0x30] sm:$0xff]
  %v28 = vld [vmem:[%s1 + $0x38] sm:$0xff]
  %v29 = vld [vmem:[%s1 + $0x40] sm:$0xff]
  %v30 = vld [vmem:[%s1 + $0x48] sm:$0xff]
  %v31 = vld [vmem:[%s1 + $0x50] sm:$0xff]
  %v32 = vld [vmem:[%s1 + $0x58] sm:$0xff]
  %v33 = vld [vmem:[%s1 + $0x60] sm:$0xff]
  %v34 = vld [vmem:[%s1 + $0x68] sm:$0xff]
  %v35 = vld [vmem:[%s1 + $0x70] sm:$0xff]
  %v36 = vld [vmem:[%s1 + $0x78] sm:$0xff]
  %v37 = vld [vmem:[%s1 + $0x80] sm:$0xff]
  %v38 = vld [vmem:[%s1 + $0x88] sm:$0xff]
  %v39 = vld [vmem:[%s1 + $0x90] sm:$0xff]
  %v40 = vld [vmem:[%s1 + $0x98] sm:$0xff]
  %v41 = vld [vmem:[%s1 + $0xa0] sm:$0xff]
  %v42 = vld [vmem:[%s1 + $0xa8] sm:$0xff]
  %v43 = vld [vmem:[%s1 + $0xb0] sm:$0xff]
  %v44 = vld [vmem:[%s1 + $0xb8] sm:$0xff]
  %v45 = vld [vmem:[%s1 + $0xc0] sm:$0xff]
  %v46 = vld [vmem:[%s1 + $0xc8] sm:$0xff]
  %v47 = vld [vmem:[%s1 + $0xd0] sm:$0xff]
  %v48 = vld [vmem:[%s1 + $0xd8] sm:$0xff]
  %v49 = vld [vmem:[%s1 + $0xe0] sm:$0xff]
  %v50 = vld [vmem:[%s1 + $0xe8] sm:$0xff]
  %v51 = vld [vmem:[%s1 + $0xf0] sm:$0xff]
  %v52 = vld [vmem:[%s1 + $0xf8] sm:$0xff]
  %v53 = vld [vmem:[%s1 + $0x100] sm:$0xff]
  %v54 = vld [vmem:[%s1 + $0x108] sm:$0xff]
  %v55 = vld [vmem:[%s1 + $0x110] sm:$0xff]
  %v56 = vld [vmem:[%s1 + $0x118] sm:$0xff]
  %v57 = vld [vmem:[%s1 + $0x120] sm:$0xff]
  %v58 = vld [vmem:[%s1 + $0x128] sm:$0xff]
  %v59 = vld [vmem:[%s1 + $0x130] sm:$0xff]
  %v60 = vld [vmem:[%s1 + $0x138] sm:$0xff]
  %v61 = vld [vmem:[%s1 + $0x140] sm:$0xff]
  %v62 = vld [vmem:[%s1 + $0x148] sm:$0xff]
  %v63 = vld [vmem:[%s1 + $0x150] sm:$0xff]
  %v64 = vld [vmem:[%s1 + $0x158] sm:$0xff]
  %v65 = vld [vmem:[%s1 + $0x160] sm:$0xff]
  %v66 = vld [vmem:[%s1 + $0x168] sm:$0xff]
  %v67 = vld [vmem:[%s1 + $0x170] sm:$0xff]
  %v68 = vld [vmem:[%s1 + $0x178] sm:$0xff]
  %v69 = vld [vmem:[%s1 + $0x180] sm:$0xff]
  %v70 = vld [vmem:[%s1 + $0x188] sm:$0xff]
  %v71 = vld [vmem:[%s1 + $0x190] sm:$0xff]
  %v72 = vld [vmem:[%s1 + $0x198] sm:$0xff]
  %v73 = vld [vmem:[%s1 + $0x1a0] sm:$0xff]
  %v74 = vld [vmem:[%s1 + $0x1a8] sm:$0xff]
  %v75 = vld [vmem:[%s1 + $0x1b0] sm:$0xff]
  %v76 = vld [vmem:[%s1 + $0x1b8] sm:$0xff]
  %v77 = vld [vmem:[%s1 + $0x1c0] sm:$0xff]
  %v78 = vld [vmem:[%s1 + $0x1c8] sm:$0xff]
  %v79 = vld [vmem:[%s1 + $0x1d0] sm:$0xff]
  %v80 = vld [vmem:[%s1 + $0x1d8] sm:$0xff]
  %v81 = vld [vmem:[%s1 + $0x1e0] sm:$0xff]
  %v82 = vld [vmem:[%s1 + $0x1e8] sm:$0xff]
  %v83 = vld [vmem:[%s1 + $0x1f0] sm:$0xff]
  %v84 = vld [vmem:[%s1 + $0x1f8] sm:$0xff]
  %v85 = vld [vmem:[%s1 + $0x200] sm:$0xff]
  %v86 = vld [vmem:[%s1 + $0x208] sm:$0xff]
  %v87 = vld [vmem:[%s1 + $0x210] sm:$0xff]
  %v88 = vld [vmem:[%s1 + $0x218] sm:$0xff]
  %v89 = vld [vmem:[%s1 + $0x220] sm:$0xff]
  %v90 = vld [vmem:[%s1 + $0x228] sm:$0xff]
  %v91 = vld [vmem:[%s1 + $0x230] sm:$0xff]
  %v92 = vld [vmem:[%s1 + $0x238] sm:$0xff]
  %v93 = vld [vmem:[%s1 + $0x240] sm:$0xff]
  %v94 = vld [vmem:[%s1 + $0x248] sm:$0xff]
  %v95 = vld [vmem:[%s1 + $0x250] sm:$0xff]
  %v96 = vld [vmem:[%s1 + $0x258] sm:$0xff]
  %v97 = vld [vmem:[%s1 + $0x260] sm:$0xff]
  %v98 = vld [vmem:[%s1 + $0x268] sm:$0xff]
  %v99 = vld [vmem:[%s1 + $0x270] sm:$0xff]
  %v100 = vld [vmem:[%s1 + $0x278] sm:$0xff]
  %v101 = vld [vmem:[%s1 + $0x280] sm:$0xff]
  %v102 = vld [vmem:[%s1 + $0x288] sm:$0xff]
  %v103 = vld [vmem:[%s1 + $0x290] sm:$0xff]
  %v104 = vld [vmem:[%s1 + $0x298] sm:$0xff]
  %v105 = vld [vmem:[%s1 + $0x2a0] sm:$0xff]
  %v106 = vld [vmem:[%s1 + $0x2a8] sm:$0xff]
  %v107 = vld [vmem:[%s1 + $0x2b0] sm:$0xff]
  %v108 = vld [vmem:[%s1 + $0x2b8] sm:$0xff]
  %v109 = vld [vmem:[%s1 + $0x2c0] sm:$0xff]
  %v110 = vld [vmem:[%s1 + $0x2c8] sm:$0xff]
  %v111 = vld [vmem:[%s1 + $0x2d0] sm:$0xff]
  %v112 = vld [vmem:[%s1 + $0x2d8] sm:$0xff]
  %v113 = vld [vmem:[%s1 + $0x2e0] sm:$0xff]
  %v114 = vld [vmem:[%s1 + $0x2e8] sm:$0xff]
  %v115 = vld [vmem:[%s1 + $0x2f0] sm:$0xff]
  %v116 = vld [vmem:[%s1 + $0x2f8] sm:$0xff]
  %v117 = vld [vmem:[%s1 + $0x300] sm:$0xff]
  %v118 = vld [vmem:[%s1 + $0x308] sm:$0xff]
  %v119 = vld [vmem:[%s1 + $0x310] sm:$0xff]
  %v120 = vld [vmem:[%s1 + $0x318] sm:$0xff]
  %v121 = vld [vmem:[%s1 + $0x320] sm:$0xff]
  %v122 = vld [vmem:[%s1 + $0x328] sm:$0xff]
  %v123 = vld [vmem:[%s1 + $0x330] sm:$0xff]
  %v124 = vld [vmem:[%s1 + $0x338] sm:$0xff]
  %v125 = vld [vmem:[%s1 + $0x340] sm:$0xff]
  %v126 = vld [vmem:[%s1 + $0x348] sm:$0xff]
  %v127 = vld [vmem:[%s1 + $0x350] sm:$0xff]
  %v128 = vld [vmem:[%s1 + $0x358] sm:$0xff]
  %v129 = vld [vmem:[%s1 + $0x360] sm:$0xff]
  %v130 = vld [vmem:[%s1 + $0x368] sm:$0xff]
  %v131 = vld [vmem:[%s1 + $0x370] sm:$0xff]
  %v132 = vld [vmem:[%s1 + $0x378] sm:$0xff]
  %v133 = vld [vmem:[%s1 + $0x380] sm:$0xff]
  %v134 = vld [vmem:[%s1 + $0x388] sm:$0xff]
  %v135 = vld [vmem:[%s1 + $0x390] sm:$0xff]
  %v136 = vld [vmem:[%s1 + $0x398] sm:$0xff]
  %v137 = vld [vmem:[%s1 + $0x3a0] sm:$0xff]
  %v138 = vld [vmem:[%s1 + $0x3a8] sm:$0xff]
  %v139 = vld [vmem:[%s1 + $0x3b0] sm:$0xff]
  %v140 = vld [vmem:[%s1 + $0x3b8] sm:$0xff]
  %v141 = vld [vmem:[%s1 + $0x3c0] sm:$0xff]
  %v142 = vld [vmem:[%s1 + $0x3c8] sm:$0xff]
  %v143 = vld [vmem:[%s1 + $0x3d0] sm:$0xff]
  %v144 = vld [vmem:[%s1 + $0x3d8] sm:$0xff]
  %v145 = vld [vmem:[%s1 + $0x3e0] sm:$0xff]
  %v146 = vld [vmem:[%s1 + $0x3e8] sm:$0xff]
  %v147 = vld [vmem:[%s1 + $0x3f0] sm:$0xff]
  %v148 = vld [vmem:[%s1 + $0x3f8] sm:$0xff]
  %v149 = vld [vmem:[%s2] sm:$0xf]
  %v151 = vlaneseq
  %v152 = vshrl.u32 %v151, 7
  %v153 = vsub.s32 0, %v152
  %v154 = vrot.slane %v20, %v153
  %v155 = vlaneseq
  %v156 = vshrl.u32 %v155, 7
  %v157 = vsub.s32 1, %v156
  %v158 = vrot.slane %v20, %v157
  %v162 = vlaneseq
  %v163 = vshrl.u32 %v162, 7
  %v164 = vsub.s32 0, %v163
  %v165 = vrot.slane %v149, %v164
  %v166 = vlaneseq
  %v167 = vshrl.u32 %v166, 7
  %v168 = vsub.s32 1, %v167
  %v169 = vrot.slane %v149, %v168
  %v170 = vlaneseq
  %v171 = vshrl.u32 %v170, 7
  %v172 = vsub.s32 2, %v171
  %v173 = vrot.slane %v149, %v172
  %v174 = vlaneseq
  %v175 = vshrl.u32 %v174, 7
  %v176 = vsub.s32 3, %v175
  %v177 = vrot.slane %v149, %v176
  %182 = vmatprep.subr.mxu0 %v22
  %183 = vmatpush1.msra.mxu0 %v21
  %184 = vmatprep.subr.mxu0 %v26
  %185 = vmatpush1.msra.mxu0 %v25
  %186 = vmatprep.subr.mxu0 %v30
  %187 = vmatpush1.msra.mxu0 %v29
  %188 = vmatprep.subr.mxu0 %v34
  %189 = vmatpush1.msra.mxu0 %v33
  %190 = vmatprep.subr.mxu0 %v38
  %191 = vmatpush1.msra.mxu0 %v37
  %192 = vmatprep.subr.mxu0 %v42
  %193 = vmatpush1.msra.mxu0 %v41
  %194 = vmatprep.subr.mxu0 %v46
  %195 = vmatpush1.msra.mxu0 %v45
  %196 = vmatprep.subr.mxu0 %v50
  %197 = vmatpush1.msra.mxu0 %v49
  %198 = vmatprep.subr.mxu0 %v54
  %199 = vmatpush1.msra.mxu0 %v53
  %200 = vmatprep.subr.mxu0 %v58
  %201 = vmatpush1.msra.mxu0 %v57
  %202 = vmatprep.subr.mxu0 %v62
  %203 = vmatpush1.msra.mxu0 %v61
  %204 = vmatprep.subr.mxu0 %v66
  %205 = vmatpush1.msra.mxu0 %v65
  %206 = vmatprep.subr.mxu0 %v70
  %207 = vmatpush1.msra.mxu0 %v69
  %208 = vmatprep.subr.mxu0 %v74
  %209 = vmatpush1.msra.mxu0 %v73
  %210 = vmatprep.subr.mxu0 %v78
  %211 = vmatpush1.msra.mxu0 %v77
  %212 = vmatprep.subr.mxu0 %v82
  %213 = vmatpush1.msra.mxu0 %v81
  %214 = vmatprep.subr.mxu0 %v86
  %215 = vmatpush1.msra.mxu0 %v85
  %216 = vmatprep.subr.mxu0 %v90
  %217 = vmatpush1.msra.mxu0 %v89
  %218 = vmatprep.subr.mxu0 %v94
  %219 = vmatpush1.msra.mxu0 %v93
  %220 = vmatprep.subr.mxu0 %v98
  %221 = vmatpush1.msra.mxu0 %v97
  %222 = vmatprep.subr.mxu0 %v102
  %223 = vmatpush1.msra.mxu0 %v101
  %224 = vmatprep.subr.mxu0 %v106
  %225 = vmatpush1.msra.mxu0 %v105
  %226 = vmatprep.subr.mxu0 %v110
  %227 = vmatpush1.msra.mxu0 %v109
  %228 = vmatprep.subr.mxu0 %v114
  %229 = vmatpush1.msra.mxu0 %v113
  %230 = vmatprep.subr.mxu0 %v118
  %231 = vmatpush1.msra.mxu0 %v117
  %232 = vmatprep.subr.mxu0 %v122
  %233 = vmatpush1.msra.mxu0 %v121
  %234 = vmatprep.subr.mxu0 %v126
  %235 = vmatpush1.msra.mxu0 %v125
  %236 = vmatprep.subr.mxu0 %v130
  %237 = vmatpush1.msra.mxu0 %v129
  %238 = vmatprep.subr.mxu0 %v134
  %239 = vmatpush1.msra.mxu0 %v133
  %240 = vmatprep.subr.mxu0 %v138
  %241 = vmatpush1.msra.mxu0 %v137
  %242 = vmatprep.subr.mxu0 %v142
  %243 = vmatpush1.msra.mxu0 %v141
  %244 = vmatprep.subr.mxu0 %v146
  %245 = vmatpush1.msra.mxu0 %v145
  %246 = vmatprep.mubr.f32.mxu0 %v158
  %247 = vmatmul.mubr.f32.gmra.mrb[0].mxu0 %v154
  %v248 = vpop.f32.mrb[0].mxu0
  %v249 = vadd.f32 %v165, %v248
  %v250 = vpop.f32.mrb[0].mxu0
  %v251 = vadd.f32 %v169, %v250
  %252 = vdwg.mxu0
  %253 = vmatprep.subr.mxu0 %v24
  %254 = vmatpush1.msra.mxu0 %v23
  %255 = vmatprep.subr.mxu0 %v28
  %256 = vmatpush1.msra.mxu0 %v27
  %257 = vmatprep.subr.mxu0 %v32
  %258 = vmatpush1.msra.mxu0 %v31
  %259 = vmatprep.subr.mxu0 %v36
  %260 = vmatpush1.msra.mxu0 %v35
  %261 = vmatprep.subr.mxu0 %v40
  %262 = vmatpush1.msra.mxu0 %v39
  %263 = vmatprep.subr.mxu0 %v44
  %264 = vmatpush1.msra.mxu0 %v43
  %265 = vmatprep.subr.mxu0 %v48
  %266 = vmatpush1.msra.mxu0 %v47
  %267 = vmatprep.subr.mxu0 %v52
  %268 = vmatpush1.msra.mxu0 %v51
  %269 = vmatprep.subr.mxu0 %v56
  %270 = vmatpush1.msra.mxu0 %v55
  %271 = vmatprep.subr.mxu0 %v60
  %272 = vmatpush1.msra.mxu0 %v59
  %273 = vmatprep.subr.mxu0 %v64
  %274 = vmatpush1.msra.mxu0 %v63
  %275 = vmatprep.subr.mxu0 %v68
  %276 = vmatpush1.msra.mxu0 %v67
  %277 = vmatprep.subr.mxu0 %v72
  %278 = vmatpush1.msra.mxu0 %v71
  %279 = vmatprep.subr.mxu0 %v76
  %280 = vmatpush1.msra.mxu0 %v75
  %281 = vmatprep.subr.mxu0 %v80
  %282 = vmatpush1.msra.mxu0 %v79
  %283 = vmatprep.subr.mxu0 %v84
  %284 = vmatpush1.msra.mxu0 %v83
  %285 = vmatprep.subr.mxu0 %v88
  %286 = vmatpush1.msra.mxu0 %v87
  %287 = vmatprep.subr.mxu0 %v92
  %288 = vmatpush1.msra.mxu0 %v91
  %289 = vmatprep.subr.mxu0 %v96
  %290 = vmatpush1.msra.mxu0 %v95
  %291 = vmatprep.subr.mxu0 %v100
  %292 = vmatpush1.msra.mxu0 %v99
  %293 = vmatprep.subr.mxu0 %v104
  %294 = vmatpush1.msra.mxu0 %v103
  %295 = vmatprep.subr.mxu0 %v108
  %296 = vmatpush1.msra.mxu0 %v107
  %297 = vmatprep.subr.mxu0 %v112
  %298 = vmatpush1.msra.mxu0 %v111
  %299 = vmatprep.subr.mxu0 %v116
  %300 = vmatpush1.msra.mxu0 %v115
  %301 = vmatprep.subr.mxu0 %v120
  %302 = vmatpush1.msra.mxu0 %v119
  %303 = vmatprep.subr.mxu0 %v124
  %304 = vmatpush1.msra.mxu0 %v123
  %305 = vmatprep.subr.mxu0 %v128
  %306 = vmatpush1.msra.mxu0 %v127
  %307 = vmatprep.subr.mxu0 %v132
  %308 = vmatpush1.msra.mxu0 %v131
  %309 = vmatprep.subr.mxu0 %v136
  %310 = vmatpush1.msra.mxu0 %v135
  %311 = vmatprep.subr.mxu0 %v140
  %312 = vmatpush1.msra.mxu0 %v139
  %313 = vmatprep.subr.mxu0 %v144
  %314 = vmatpush1.msra.mxu0 %v143
  %315 = vmatprep.subr.mxu0 %v148
  %316 = vmatpush1.msra.mxu0 %v147
  %317 = vmatprep.mubr.f32.mxu0 %v158
  %318 = vmatmul.mubr.f32.gmra.mrb[0].mxu0 %v154
  %v319 = vpop.f32.mrb[0].mxu0
  %v320 = vadd.f32 %v173, %v319
  %v321 = vpop.f32.mrb[0].mxu0
  %v322 = vadd.f32 %v177, %v321
  %323 = vdwg.mxu0
  %v324 = vtanh.pop %v249
  %v325 = vtanh.pop %v251
  %v326 = vtanh.pop %v320
  %v327 = vtanh.pop %v322
  %v328 = vmul.f32 %v324, %v324
  %v329 = vmul.f32 %v325, %v325
  %v330 = vmul.f32 %v326, %v326
  %v331 = vmul.f32 %v327, %v327
  %v332 = vsub.f32 1.0, %v328
  %v333 = vsub.f32 1.0, %v329
  %v334 = vsub.f32 1.0, %v330
  %v335 = vsub.f32 1.0, %v331
  %v336 = vld [vmem:[%s3] sm:$0xf]
  %v338 = vlaneseq
  %v339 = vshrl.u32 %v338, 7
  %v340 = vsub.s32 0, %v339
  %v341 = vrot.slane %v336, %v340
  %v342 = vlaneseq
  %v343 = vshrl.u32 %v342, 7
  %v344 = vsub.s32 1, %v343
  %v345 = vrot.slane %v336, %v344
  %v346 = vlaneseq
  %v347 = vshrl.u32 %v346, 7
  %v348 = vsub.s32 2, %v347
  %v349 = vrot.slane %v336, %v348
  %v350 = vlaneseq
  %v351 = vshrl.u32 %v350, 7
  %v352 = vsub.s32 3, %v351
  %v353 = vrot.slane %v336, %v352
  %v358 = vmul.f32 %v332, %v341
  %v359 = vmul.f32 %v333, %v345
  %v360 = vmul.f32 %v334, %v349
  %v361 = vmul.f32 %v335, %v353
  %v362 = vld [vmem:[%s4] sm:$0xff]
  %v363 = vld [vmem:[%s4 + $0x8] sm:$0xff]
  %v364 = vld [vmem:[%s4 + $0x10] sm:$0xff]
  %v365 = vld [vmem:[%s4 + $0x18] sm:$0xff]
  %v366 = vld [vmem:[%s4 + $0x20] sm:$0xff]
  %v367 = vld [vmem:[%s4 + $0x28] sm:$0xff]
  %v368 = vld [vmem:[%s4 + $0x30] sm:$0xff]
  %v369 = vld [vmem:[%s4 + $0x38] sm:$0xff]
  %v370 = vld [vmem:[%s4 + $0x40] sm:$0xff]
  %v371 = vld [vmem:[%s4 + $0x48] sm:$0xff]
  %v372 = vld [vmem:[%s4 + $0x50] sm:$0xff]
  %v373 = vld [vmem:[%s4 + $0x58] sm:$0xff]
  %v374 = vld [vmem:[%s4 + $0x60] sm:$0xff]
  %v375 = vld [vmem:[%s4 + $0x68] sm:$0xff]
  %v376 = vld [vmem:[%s4 + $0x70] sm:$0xff]
  %v377 = vld [vmem:[%s4 + $0x78] sm:$0xff]
  %v378 = vld [vmem:[%s4 + $0x80] sm:$0xff]
  %v379 = vld [vmem:[%s4 + $0x88] sm:$0xff]
  %v380 = vld [vmem:[%s4 + $0x90] sm:$0xff]
  %v381 = vld [vmem:[%s4 + $0x98] sm:$0xff]
  %v382 = vld [vmem:[%s4 + $0xa0] sm:$0xff]
  %v383 = vld [vmem:[%s4 + $0xa8] sm:$0xff]
  %v384 = vld [vmem:[%s4 + $0xb0] sm:$0xff]
  %v385 = vld [vmem:[%s4 + $0xb8] sm:$0xff]
  %v386 = vld [vmem:[%s4 + $0xc0] sm:$0xff]
  %v387 = vld [vmem:[%s4 + $0xc8] sm:$0xff]
  %v388 = vld [vmem:[%s4 + $0xd0] sm:$0xff]
  %v389 = vld [vmem:[%s4 + $0xd8] sm:$0xff]
  %v390 = vld [vmem:[%s4 + $0xe0] sm:$0xff]
  %v391 = vld [vmem:[%s4 + $0xe8] sm:$0xff]
  %v392 = vld [vmem:[%s4 + $0xf0] sm:$0xff]
  %v393 = vld [vmem:[%s4 + $0xf8] sm:$0xff]
  %v394 = vld [vmem:[%s4 + $0x100] sm:$0xff]
  %v395 = vld [vmem:[%s4 + $0x108] sm:$0xff]
  %v396 = vld [vmem:[%s4 + $0x110] sm:$0xff]
  %v397 = vld [vmem:[%s4 + $0x118] sm:$0xff]
  %v398 = vld [vmem:[%s4 + $0x120] sm:$0xff]
  %v399 = vld [vmem:[%s4 + $0x128] sm:$0xff]
  %v400 = vld [vmem:[%s4 + $0x130] sm:$0xff]
  %v401 = vld [vmem:[%s4 + $0x138] sm:$0xff]
  %v402 = vld [vmem:[%s4 + $0x140] sm:$0xff]
  %v403 = vld [vmem:[%s4 + $0x148] sm:$0xff]
  %v404 = vld [vmem:[%s4 + $0x150] sm:$0xff]
  %v405 = vld [vmem:[%s4 + $0x158] sm:$0xff]
  %v406 = vld [vmem:[%s4 + $0x160] sm:$0xff]
  %v407 = vld [vmem:[%s4 + $0x168] sm:$0xff]
  %v408 = vld [vmem:[%s4 + $0x170] sm:$0xff]
  %v409 = vld [vmem:[%s4 + $0x178] sm:$0xff]
  %v410 = vld [vmem:[%s4 + $0x180] sm:$0xff]
  %v411 = vld [vmem:[%s4 + $0x188] sm:$0xff]
  %v412 = vld [vmem:[%s4 + $0x190] sm:$0xff]
  %v413 = vld [vmem:[%s4 + $0x198] sm:$0xff]
  %v414 = vld [vmem:[%s4 + $0x1a0] sm:$0xff]
  %v415 = vld [vmem:[%s4 + $0x1a8] sm:$0xff]
  %v416 = vld [vmem:[%s4 + $0x1b0] sm:$0xff]
  %v417 = vld [vmem:[%s4 + $0x1b8] sm:$0xff]
  %v418 = vld [vmem:[%s4 + $0x1c0] sm:$0xff]
  %v419 = vld [vmem:[%s4 + $0x1c8] sm:$0xff]
  %v420 = vld [vmem:[%s4 + $0x1d0] sm:$0xff]
  %v421 = vld [vmem:[%s4 + $0x1d8] sm:$0xff]
  %v422 = vld [vmem:[%s4 + $0x1e0] sm:$0xff]
  %v423 = vld [vmem:[%s4 + $0x1e8] sm:$0xff]
  %v424 = vld [vmem:[%s4 + $0x1f0] sm:$0xff]
  %v425 = vld [vmem:[%s4 + $0x1f8] sm:$0xff]
  %v426 = vld [vmem:[%s4 + $0x200] sm:$0xff]
  %v427 = vld [vmem:[%s4 + $0x208] sm:$0xff]
  %v428 = vld [vmem:[%s4 + $0x210] sm:$0xff]
  %v429 = vld [vmem:[%s4 + $0x218] sm:$0xff]
  %v430 = vld [vmem:[%s4 + $0x220] sm:$0xff]
  %v431 = vld [vmem:[%s4 + $0x228] sm:$0xff]
  %v432 = vld [vmem:[%s4 + $0x230] sm:$0xff]
  %v433 = vld [vmem:[%s4 + $0x238] sm:$0xff]
  %v434 = vld [vmem:[%s4 + $0x240] sm:$0xff]
  %v435 = vld [vmem:[%s4 + $0x248] sm:$0xff]
  %v436 = vld [vmem:[%s4 + $0x250] sm:$0xff]
  %v437 = vld [vmem:[%s4 + $0x258] sm:$0xff]
  %v438 = vld [vmem:[%s4 + $0x260] sm:$0xff]
  %v439 = vld [vmem:[%s4 + $0x268] sm:$0xff]
  %v440 = vld [vmem:[%s4 + $0x270] sm:$0xff]
  %v441 = vld [vmem:[%s4 + $0x278] sm:$0xff]
  %v442 = vld [vmem:[%s4 + $0x280] sm:$0xff]
  %v443 = vld [vmem:[%s4 + $0x288] sm:$0xff]
  %v444 = vld [vmem:[%s4 + $0x290] sm:$0xff]
  %v445 = vld [vmem:[%s4 + $0x298] sm:$0xff]
  %v446 = vld [vmem:[%s4 + $0x2a0] sm:$0xff]
  %v447 = vld [vmem:[%s4 + $0x2a8] sm:$0xff]
  %v448 = vld [vmem:[%s4 + $0x2b0] sm:$0xff]
  %v449 = vld [vmem:[%s4 + $0x2b8] sm:$0xff]
  %v450 = vld [vmem:[%s4 + $0x2c0] sm:$0xff]
  %v451 = vld [vmem:[%s4 + $0x2c8] sm:$0xff]
  %v452 = vld [vmem:[%s4 + $0x2d0] sm:$0xff]
  %v453 = vld [vmem:[%s4 + $0x2d8] sm:$0xff]
  %v454 = vld [vmem:[%s4 + $0x2e0] sm:$0xff]
  %v455 = vld [vmem:[%s4 + $0x2e8] sm:$0xff]
  %v456 = vld [vmem:[%s4 + $0x2f0] sm:$0xff]
  %v457 = vld [vmem:[%s4 + $0x2f8] sm:$0xff]
  %v458 = vld [vmem:[%s4 + $0x300] sm:$0xff]
  %v459 = vld [vmem:[%s4 + $0x308] sm:$0xff]
  %v460 = vld [vmem:[%s4 + $0x310] sm:$0xff]
  %v461 = vld [vmem:[%s4 + $0x318] sm:$0xff]
  %v462 = vld [vmem:[%s4 + $0x320] sm:$0xff]
  %v463 = vld [vmem:[%s4 + $0x328] sm:$0xff]
  %v464 = vld [vmem:[%s4 + $0x330] sm:$0xff]
  %v465 = vld [vmem:[%s4 + $0x338] sm:$0xff]
  %v466 = vld [vmem:[%s4 + $0x340] sm:$0xff]
  %v467 = vld [vmem:[%s4 + $0x348] sm:$0xff]
  %v468 = vld [vmem:[%s4 + $0x350] sm:$0xff]
  %v469 = vld [vmem:[%s4 + $0x358] sm:$0xff]
  %v470 = vld [vmem:[%s4 + $0x360] sm:$0xff]
  %v471 = vld [vmem:[%s4 + $0x368] sm:$0xff]
  %v472 = vld [vmem:[%s4 + $0x370] sm:$0xff]
  %v473 = vld [vmem:[%s4 + $0x378] sm:$0xff]
  %v474 = vld [vmem:[%s4 + $0x380] sm:$0xff]
  %v475 = vld [vmem:[%s4 + $0x388] sm:$0xff]
  %v476 = vld [vmem:[%s4 + $0x390] sm:$0xff]
  %v477 = vld [vmem:[%s4 + $0x398] sm:$0xff]
  %v478 = vld [vmem:[%s4 + $0x3a0] sm:$0xff]
  %v479 = vld [vmem:[%s4 + $0x3a8] sm:$0xff]
  %v480 = vld [vmem:[%s4 + $0x3b0] sm:$0xff]
  %v481 = vld [vmem:[%s4 + $0x3b8] sm:$0xff]
  %v482 = vld [vmem:[%s4 + $0x3c0] sm:$0xff]
  %v483 = vld [vmem:[%s4 + $0x3c8] sm:$0xff]
  %v484 = vld [vmem:[%s4 + $0x3d0] sm:$0xff]
  %v485 = vld [vmem:[%s4 + $0x3d8] sm:$0xff]
  %v486 = vld [vmem:[%s4 + $0x3e0] sm:$0xff]
  %v487 = vld [vmem:[%s4 + $0x3e8] sm:$0xff]
  %v488 = vld [vmem:[%s4 + $0x3f0] sm:$0xff]
  %v489 = vld [vmem:[%s4 + $0x3f8] sm:$0xff]
  %490 = vmatprep.subr.mxu0 %v363
  %491 = vmatpush1.msra.mxu0 %v362
  %492 = vmatprep.subr.mxu0 %v365
  %493 = vmatpush1.msra.mxu0 %v364
  %494 = vmatprep.subr.mxu0 %v367
  %495 = vmatpush1.msra.mxu0 %v366
  %496 = vmatprep.subr.mxu0 %v369
  %497 = vmatpush1.msra.mxu0 %v368
  %498 = vmatprep.subr.mxu0 %v371
  %499 = vmatpush1.msra.mxu0 %v370
  %500 = vmatprep.subr.mxu0 %v373
  %501 = vmatpush1.msra.mxu0 %v372
  %502 = vmatprep.subr.mxu0 %v375
  %503 = vmatpush1.msra.mxu0 %v374
  %504 = vmatprep.subr.mxu0 %v377
  %505 = vmatpush1.msra.mxu0 %v376
  %506 = vmatprep.subr.mxu0 %v379
  %507 = vmatpush1.msra.mxu0 %v378
  %508 = vmatprep.subr.mxu0 %v381
  %509 = vmatpush1.msra.mxu0 %v380
  %510 = vmatprep.subr.mxu0 %v383
  %511 = vmatpush1.msra.mxu0 %v382
  %512 = vmatprep.subr.mxu0 %v385
  %513 = vmatpush1.msra.mxu0 %v384
  %514 = vmatprep.subr.mxu0 %v387
  %515 = vmatpush1.msra.mxu0 %v386
  %516 = vmatprep.subr.mxu0 %v389
  %517 = vmatpush1.msra.mxu0 %v388
  %518 = vmatprep.subr.mxu0 %v391
  %519 = vmatpush1.msra.mxu0 %v390
  %520 = vmatprep.subr.mxu0 %v393
  %521 = vmatpush1.msra.mxu0 %v392
  %522 = vmatprep.subr.mxu0 %v395
  %523 = vmatpush1.msra.mxu0 %v394
  %524 = vmatprep.subr.mxu0 %v397
  %525 = vmatpush1.msra.mxu0 %v396
  %526 = vmatprep.subr.mxu0 %v399
  %527 = vmatpush1.msra.mxu0 %v398
  %528 = vmatprep.subr.mxu0 %v401
  %529 = vmatpush1.msra.mxu0 %v400
  %530 = vmatprep.subr.mxu0 %v403
  %531 = vmatpush1.msra.mxu0 %v402
  %532 = vmatprep.subr.mxu0 %v405
  %533 = vmatpush1.msra.mxu0 %v404
  %534 = vmatprep.subr.mxu0 %v407
  %535 = vmatpush1.msra.mxu0 %v406
  %536 = vmatprep.subr.mxu0 %v409
  %537 = vmatpush1.msra.mxu0 %v408
  %538 = vmatprep.subr.mxu0 %v411
  %539 = vmatpush1.msra.mxu0 %v410
  %540 = vmatprep.subr.mxu0 %v413
  %541 = vmatpush1.msra.mxu0 %v412
  %542 = vmatprep.subr.mxu0 %v415
  %543 = vmatpush1.msra.mxu0 %v414
  %544 = vmatprep.subr.mxu0 %v417
  %545 = vmatpush1.msra.mxu0 %v416
  %546 = vmatprep.subr.mxu0 %v419
  %547 = vmatpush1.msra.mxu0 %v418
  %548 = vmatprep.subr.mxu0 %v421
  %549 = vmatpush1.msra.mxu0 %v420
  %550 = vmatprep.subr.mxu0 %v423
  %551 = vmatpush1.msra.mxu0 %v422
  %552 = vmatprep.subr.mxu0 %v425
  %553 = vmatpush1.msra.mxu0 %v424
  %554 = vmatprep.mubr.f32.mxu0 %v359
  %555 = vmatmul.mubr.f32.gmra.mrb[0].mxu0 %v358
  %v556 = vpop.f32.mrb[0].mxu0
  %v557 = vadd.f32 0.0, %v556
  %v558 = vpop.f32.mrb[0].mxu0
  %v559 = vadd.f32 0.0, %v558
  %560 = vdwg.mxu0
  %561 = vmatprep.subr.mxu0 %v427
  %562 = vmatpush1.msra.mxu0 %v426
  %563 = vmatprep.subr.mxu0 %v429
  %564 = vmatpush1.msra.mxu0 %v428
  %565 = vmatprep.subr.mxu0 %v431
  %566 = vmatpush1.msra.mxu0 %v430
  %567 = vmatprep.subr.mxu0 %v433
  %568 = vmatpush1.msra.mxu0 %v432
  %569 = vmatprep.subr.mxu0 %v435
  %570 = vmatpush1.msra.mxu0 %v434
  %571 = vmatprep.subr.mxu0 %v437
  %572 = vmatpush1.msra.mxu0 %v436
  %573 = vmatprep.subr.mxu0 %v439
  %574 = vmatpush1.msra.mxu0 %v438
  %575 = vmatprep.subr.mxu0 %v441
  %576 = vmatpush1.msra.mxu0 %v440
  %577 = vmatprep.subr.mxu0 %v443
  %578 = vmatpush1.msra.mxu0 %v442
  %579 = vmatprep.subr.mxu0 %v445
  %580 = vmatpush1.msra.mxu0 %v444
  %581 = vmatprep.subr.mxu0 %v447
  %582 = vmatpush1.msra.mxu0 %v446
  %583 = vmatprep.subr.mxu0 %v449
  %584 = vmatpush1.msra.mxu0 %v448
  %585 = vmatprep.subr.mxu0 %v451
  %586 = vmatpush1.msra.mxu0 %v450
  %587 = vmatprep.subr.mxu0 %v453
  %588 = vmatpush1.msra.mxu0 %v452
  %589 = vmatprep.subr.mxu0 %v455
  %590 = vmatpush1.msra.mxu0 %v454
  %591 = vmatprep.subr.mxu0 %v457
  %592 = vmatpush1.msra.mxu0 %v456
  %593 = vmatprep.subr.mxu0 %v459
  %594 = vmatpush1.msra.mxu0 %v458
  %595 = vmatprep.subr.mxu0 %v461
  %596 = vmatpush1.msra.mxu0 %v460
  %597 = vmatprep.subr.mxu0 %v463
  %598 = vmatpush1.msra.mxu0 %v462
  %599 = vmatprep.subr.mxu0 %v465
  %600 = vmatpush1.msra.mxu0 %v464
  %601 = vmatprep.subr.mxu0 %v467
  %602 = vmatpush1.msra.mxu0 %v466
  %603 = vmatprep.subr.mxu0 %v469
  %604 = vmatpush1.msra.mxu0 %v468
  %605 = vmatprep.subr.mxu0 %v471
  %606 = vmatpush1.msra.mxu0 %v470
  %607 = vmatprep.subr.mxu0 %v473
  %608 = vmatpush1.msra.mxu0 %v472
  %609 = vmatprep.subr.mxu0 %v475
  %610 = vmatpush1.msra.mxu0 %v474
  %611 = vmatprep.subr.mxu0 %v477
  %612 = vmatpush1.msra.mxu0 %v476
  %613 = vmatprep.subr.mxu0 %v479
  %614 = vmatpush1.msra.mxu0 %v478
  %615 = vmatprep.subr.mxu0 %v481
  %616 = vmatpush1.msra.mxu0 %v480
  %617 = vmatprep.subr.mxu0 %v483
  %618 = vmatpush1.msra.mxu0 %v482
  %619 = vmatprep.subr.mxu0 %v485
  %620 = vmatpush1.msra.mxu0 %v484
  %621 = vmatprep.subr.mxu0 %v487
  %622 = vmatpush1.msra.mxu0 %v486
  %623 = vmatprep.subr.mxu0 %v489
  %624 = vmatpush1.msra.mxu0 %v488
  %625 = vmatprep.mubr.f32.mxu0 %v361
  %626 = vmatmul.mubr.f32.gmra.mrb[0].mxu0 %v360
  %v627 = vpop.f32.mrb[0].mxu0
  %v628 = vadd.f32 %v557, %v627
  %v629 = vpop.f32.mrb[0].mxu0
  %v630 = vadd.f32 %v559, %v629
  %631 = vdwg.mxu0
  %v634 = vcombine.low %v628, %v630
  %v636 = vunpack.c.l.s4 1966171168
  %v637 = vunpack.c.0.s8 %v636
  %v638 = vlaneseq
  %v639 = vshrl.u32 %v638, 7
  %v640 = vsub.s32 %v637, %v639
  %v641 = vrot.slane %v634, %v640
  %v643 = vunpack.c.l.s4 1966171168
  %v644 = vunpack.c.0.s8 %v643
  %v645 = vlaneseq
  %v646 = vshrl.u32 %v645, 7
  %v647 = vsub.s32 %v644, %v646
  %v648 = vrot.slane %v641, %v647
  %v650 = vlaneseq
  %vm651 = vcmp.ge.s32.totalorder %v650, 0
  %vm652 = vcmp.lt.s32.totalorder %v650, 256
  %vm653 = vmand %vm651, %vm652
  %654 = vst.msk [vmem:[%s5] sm:$0x3] %vm653, %v648
  // Predicated region
  $region22: #{hdnet_forward.1} parent=0 // pred_check
    _
  $region23: #{hdnet_forward.1} parent=0 // pred_check_branch
    %656 = sbr.rel (0) target = $region25
  $region24: #{hdnet_forward.1} parent=0 // pred_region
    _
  $region25: #{hdnet_forward.1} parent=0 // pred_fallthru
    _
  // Predicated region
  $region26: #{hdnet_forward.1} parent=0 // pred_check
    _
  $region27: #{hdnet_forward.1} parent=0 // pred_check_branch
    %658 = sbr.rel (0) target = $region29
  $region28: #{hdnet_forward.1} parent=0 // pred_region
    _
  $region29: #{hdnet_forward.1} parent=0 // pred_fallthru
    _

</llo_original>
